<compile_context>
chip_gen: v5e
topology: v5e:2x2
jax: 0.10.0
libtpu: 0.0.40
codegen_flags: <defaults>
</compile_context>

<pallas_src>
import functools

import jax
import jax.numpy as jnp
from jax.experimental import pallas as pl
from jax.experimental.pallas import tpu as pltpu


def _hardsigmoid_kernel(x_ref, o_ref, *, slope, offset, left, right):
    # slope/offset/left/right are static Python floats -> fold to immediates.
    x = x_ref[...]
    mid = x * slope + offset
    out = jnp.where(x <= left, 0.0, jnp.where(x >= right, 1.0, mid))
    o_ref[...] = out.astype(o_ref.dtype)


@functools.partial(
    jax.jit,
    static_argnames=("slope", "offset", "left_interval", "right_interval"),
)
def hardsigmoid(x, slope=1.0 / 6.0, offset=0.5, left_interval=-3.0,
                right_interval=3.0):
    orig_shape = x.shape
    orig_dtype = x.dtype
    total = x.size

    # Wide lane-dense slab: 1024 lanes (multiple of 128) for unmasked stores
    # and big contiguous DMAs.
    lane = 1024

    # Sublane granularity by dtype packing: f32 -> 8, bf16 -> 16, int8 -> 32.
    itemsize = jnp.dtype(orig_dtype).itemsize
    sub = 8 * max(1, 4 // itemsize)

    rows_min = -(-total // lane)          # ceil(total / lane)

    # Tile sizing: up to 512 rows x 1024 lanes (2 MiB f32 per buffer; 8 MiB
    # total with in/out double buffering -> fits every generation's scoped
    # VMEM default). No divisor search: we pad rows up to a block multiple.
    max_block_rows = 512
    if rows_min >= 2 * max_block_rows:
        block_rows = max_block_rows
    elif rows_min >= 2 * sub:
        # Split into ~2 blocks so a megacore (v7x) can shard the grid.
        half = -(-rows_min // 2)
        block_rows = -(-half // sub) * sub
    else:
        block_rows = sub
    rows = -(-rows_min // block_rows) * block_rows
    num_blocks = rows // block_rows

    padded = rows * lane
    x_flat = jnp.ravel(x)
    if padded != total:
        x_flat = jnp.pad(x_flat, (0, padded - total))
    x2d = x_flat.reshape(rows, lane)

    kernel = functools.partial(
        _hardsigmoid_kernel,
        slope=float(slope), offset=float(offset),
        left=float(left_interval), right=float(right_interval))

    out2d = pl.pallas_call(
        kernel,
        out_shape=jax.ShapeDtypeStruct((rows, lane), orig_dtype),
        grid=(num_blocks,),
        in_specs=[pl.BlockSpec((block_rows, lane), lambda i: (i, 0))],
        out_specs=pl.BlockSpec((block_rows, lane), lambda i: (i, 0)),
        compiler_params=pltpu.CompilerParams(
            dimension_semantics=("parallel",)),
    )(x2d)

    out_flat = out2d.reshape(-1)[:total]
    return out_flat.reshape(orig_shape)


if __name__ == "__main__":
    key = jax.random.PRNGKey(0)
    # NCHW input, matching the PyTorch module's expected layout.
    x = jax.random.normal(key, (2, 4, 16, 16), dtype=jnp.float32) * 4.0
    y = hardsigmoid(x)
    y = jax.block_until_ready(y)

    # Pure-JAX reference (same piecewise definition as the PyTorch module).
    ref = jnp.where(x <= -3.0, 0.0,
                    jnp.where(x >= 3.0, 1.0, x * (1.0 / 6.0) + 0.5))
    assert y.shape == x.shape and y.dtype == x.dtype
    assert jnp.allclose(y, ref, atol=1e-6), "mismatch vs reference"
    print("KERNEL_OK")
</pallas_src>

<mosaic_0001>
module attributes {stable_mosaic.version = 11 : i64} {
  func.func @_hardsigmoid_kernel(%arg0: i32, %arg1: memref<8x1024xf32, #tpu.memory_space<vmem>>, %arg2: memref<8x1024xf32, #tpu.memory_space<vmem>>) attributes {dimension_semantics = [#tpu.dimension_semantics<parallel>], iteration_bounds = array<i64: 1>, scalar_prefetch = 0 : i64, scratch_operands = 0 : i64, tpu.core_type = #tpu.core_type<tc>, window_params = [{transform_indices = @transform_0, window_bounds = array<i64: 8, 1024>}, {transform_indices = @transform_1, window_bounds = array<i64: 8, 1024>}]} {
    %c0 = arith.constant 0 : index
    %c0_0 = arith.constant 0 : index
    %0 = vector.load %arg1[%c0, %c0_0] : memref<8x1024xf32, #tpu.memory_space<vmem>>, vector<8x1024xf32>
    %cst = arith.constant 0.166666672 : f32
    %1 = vector.broadcast %cst : f32 to vector<8x1024xf32>
    %2 = arith.mulf %0, %1 : vector<8x1024xf32>
    %cst_1 = arith.constant 5.000000e-01 : f32
    %3 = vector.broadcast %cst_1 : f32 to vector<8x1024xf32>
    %4 = arith.addf %2, %3 : vector<8x1024xf32>
    %cst_2 = arith.constant -3.000000e+00 : f32
    %5 = vector.broadcast %cst_2 : f32 to vector<8x1024xf32>
    %6 = arith.cmpf ole, %0, %5 : vector<8x1024xf32>
    %cst_3 = arith.constant 3.000000e+00 : f32
    %7 = vector.broadcast %cst_3 : f32 to vector<8x1024xf32>
    %8 = arith.cmpf oge, %0, %7 : vector<8x1024xf32>
    %cst_4 = arith.constant 1.000000e+00 : f32
    %9 = vector.broadcast %cst_4 : f32 to vector<8x1024xf32>
    %10 = arith.select %8, %9, %4 : vector<8x1024xi1>, vector<8x1024xf32>
    %cst_5 = arith.constant 0.000000e+00 : f32
    %11 = vector.broadcast %cst_5 : f32 to vector<8x1024xf32>
    %12 = arith.select %6, %11, %10 : vector<8x1024xi1>, vector<8x1024xf32>
    %c0_6 = arith.constant 0 : index
    %c0_7 = arith.constant 0 : index
    %13 = vector.load %arg2[%c0_6, %c0_7] : memref<8x1024xf32, #tpu.memory_space<vmem>>, vector<8x1024xf32>
    tpu.vector_store %arg2[%c0_6, %c0_7], %12 {strides = array<i32>} : memref<8x1024xf32, #tpu.memory_space<vmem>>, vector<8x1024xf32>,
    return
  }
  func.func @transform_0(%arg0: i32) -> (i32, i32) {
    %c0_i32 = arith.constant 0 : i32
    %c0_i32_0 = arith.constant 0 : i32
    return %arg0, %c0_i32 : i32, i32
  }
  func.func @transform_1(%arg0: i32) -> (i32, i32) {
    %c0_i32 = arith.constant 0 : i32
    %c0_i32_0 = arith.constant 0 : i32
    return %arg0, %c0_i32 : i32, i32
  }
}

</mosaic_0001>

<llo_original>
// kernel: hardsigmoid.1
$region0: #{hardsigmoid.1}
  #allocation0 [shape = 'u32[]', space=smem, size = 0x4, offset = 0x4, fixed_abs, tag = 'smem constant byte address 0x4 - core index']
  #allocation1 [shape = 'u32[72,128]{1,0:T(1,128)}', space=vmem, size = 0x9000, scoped, tag = 'internal scratch']
  %s0 = inlined_call_operand.vmem [shape: f32[8,1024], index: 0, kind: input, shape index: {}]
  %s1 = inlined_call_operand.vmem [shape: f32[8,1024], index: 1, kind: output, shape index: {}]
  %s2 = sld [smem:[#allocation0]]
  $region14: #{hardsigmoid.1} parent=0
    _
  %s4 = ssub.s32 1, %s2
  %s5 = scalar_select 0, %s4, %s2
  // Predicated region
  $region2: #{hardsigmoid.1} parent=0 // pred_check
    _
  $region3: #{hardsigmoid.1} parent=0 // pred_check_branch
    %7 = sbr.rel (0) target = $region5
  $region4: #{hardsigmoid.1} parent=0 // pred_region
    _
  $region5: #{hardsigmoid.1} parent=0 // pred_fallthru
    _
  %v8 = vld [vmem:[%s0] sm:$0xff]
  %v9 = vld [vmem:[%s0 + $0x8] sm:$0xff]
  %v10 = vld [vmem:[%s0 + $0x10] sm:$0xff]
  %v11 = vld [vmem:[%s0 + $0x18] sm:$0xff]
  %v12 = vld [vmem:[%s0 + $0x20] sm:$0xff]
  %v13 = vld [vmem:[%s0 + $0x28] sm:$0xff]
  %v14 = vld [vmem:[%s0 + $0x30] sm:$0xff]
  %v15 = vld [vmem:[%s0 + $0x38] sm:$0xff]
  %v16 = vmul.f32 %v8, 0.16666667
  %v17 = vmul.f32 %v9, 0.16666667
  %v18 = vmul.f32 %v10, 0.16666667
  %v19 = vmul.f32 %v11, 0.16666667
  %v20 = vmul.f32 %v12, 0.16666667
  %v21 = vmul.f32 %v13, 0.16666667
  %v22 = vmul.f32 %v14, 0.16666667
  %v23 = vmul.f32 %v15, 0.16666667
  %v24 = vadd.f32 %v16, 0.5
  %v25 = vadd.f32 %v17, 0.5
  %v26 = vadd.f32 %v18, 0.5
  %v27 = vadd.f32 %v19, 0.5
  %v28 = vadd.f32 %v20, 0.5
  %v29 = vadd.f32 %v21, 0.5
  %v30 = vadd.f32 %v22, 0.5
  %v31 = vadd.f32 %v23, 0.5
  %vm32 = vcmp.le.f32.partialorder %v8, -3.0
  %vm33 = vcmp.le.f32.partialorder %v9, -3.0
  %vm34 = vcmp.le.f32.partialorder %v10, -3.0
  %vm35 = vcmp.le.f32.partialorder %v11, -3.0
  %vm36 = vcmp.le.f32.partialorder %v12, -3.0
  %vm37 = vcmp.le.f32.partialorder %v13, -3.0
  %vm38 = vcmp.le.f32.partialorder %v14, -3.0
  %vm39 = vcmp.le.f32.partialorder %v15, -3.0
  %vm40 = vcmp.ge.f32.partialorder %v8, 3.0
  %vm41 = vcmp.ge.f32.partialorder %v9, 3.0
  %vm42 = vcmp.ge.f32.partialorder %v10, 3.0
  %vm43 = vcmp.ge.f32.partialorder %v11, 3.0
  %vm44 = vcmp.ge.f32.partialorder %v12, 3.0
  %vm45 = vcmp.ge.f32.partialorder %v13, 3.0
  %vm46 = vcmp.ge.f32.partialorder %v14, 3.0
  %vm47 = vcmp.ge.f32.partialorder %v15, 3.0
  %v48 = vsel %vm40, 1.0, %v24
  %v49 = vsel %vm41, 1.0, %v25
  %v50 = vsel %vm42, 1.0, %v26
  %v51 = vsel %vm43, 1.0, %v27
  %v52 = vsel %vm44, 1.0, %v28
  %v53 = vsel %vm45, 1.0, %v29
  %v54 = vsel %vm46, 1.0, %v30
  %v55 = vsel %vm47, 1.0, %v31
  %v56 = vsel %vm32, 0.0, %v48
  %v57 = vsel %vm33, 0.0, %v49
  %v58 = vsel %vm34, 0.0, %v50
  %v59 = vsel %vm35, 0.0, %v51
  %v60 = vsel %vm36, 0.0, %v52
  %v61 = vsel %vm37, 0.0, %v53
  %v62 = vsel %vm38, 0.0, %v54
  %v63 = vsel %vm39, 0.0, %v55
  %64 = vst [vmem:[%s1] sm:$0xff] %v56
  %65 = vst [vmem:[%s1 + $0x8] sm:$0xff] %v57
  %66 = vst [vmem:[%s1 + $0x10] sm:$0xff] %v58
  %67 = vst [vmem:[%s1 + $0x18] sm:$0xff] %v59
  %68 = vst [vmem:[%s1 + $0x20] sm:$0xff] %v60
  %69 = vst [vmem:[%s1 + $0x28] sm:$0xff] %v61
  %70 = vst [vmem:[%s1 + $0x30] sm:$0xff] %v62
  %71 = vst [vmem:[%s1 + $0x38] sm:$0xff] %v63
  // Predicated region
  $region6: #{hardsigmoid.1} parent=0 // pred_check
    _
  $region7: #{hardsigmoid.1} parent=0 // pred_check_branch
    %73 = sbr.rel (0) target = $region9
  $region8: #{hardsigmoid.1} parent=0 // pred_region
    _
  $region9: #{hardsigmoid.1} parent=0 // pred_fallthru
    _
  // Predicated region
  $region10: #{hardsigmoid.1} parent=0 // pred_check
    _
  $region11: #{hardsigmoid.1} parent=0 // pred_check_branch
    %75 = sbr.rel (0) target = $region13
  $region12: #{hardsigmoid.1} parent=0 // pred_region
    _
  $region13: #{hardsigmoid.1} parent=0 // pred_fallthru
    _

</llo_original>
